<compile_context>
chip_gen: v5e
topology: v5e:2x2
jax: 0.10.0
libtpu: 0.0.40
codegen_flags: <defaults>
</compile_context>

<pallas_src>
import jax
import jax.numpy as jnp
from jax import lax
from jax.experimental import pallas as pl
from jax.experimental.pallas import tpu as pltpu

BLOCK_SIZE = 3  # matches `block_size = 3` in the PyTorch module


def _head_kernel(x_ref, w_ref, o_ref):
    # x_ref: (B, T, C) f32   -- whole problem resident in VMEM
    # w_ref: (C, 3H)  bf16   -- fused [W_k | W_q * C**-0.5 | W_v]
    # o_ref: (B, T, H) f32
    x = x_ref[...].astype(jnp.bfloat16)   # MXU-native input path (f32 accumulate)
    w = w_ref[...]                        # already bf16

    B, T, C = x.shape
    H = o_ref.shape[-1]

    # Fused K/Q/V projection: one (B,T,C) x (C,3H) MXU contraction.
    kqv = lax.dot_general(
        x, w,
        dimension_numbers=(((2,), (0,)), ((), ())),
        preferred_element_type=jnp.float32,
    )                                     # (B, T, 3H) f32
    k = kqv[:, :, 0 * H:1 * H]
    q = kqv[:, :, 1 * H:2 * H]            # already carries the C**-0.5 scale
    v = kqv[:, :, 2 * H:3 * H]

    # Scores: contract head dim, batched over B (no explicit transpose).
    s = lax.dot_general(
        q.astype(jnp.bfloat16), k.astype(jnp.bfloat16),
        dimension_numbers=(((2,), (2,)), ((0,), (0,))),
        preferred_element_type=jnp.float32,
    )                                     # (B, T, T) f32

    # Causal mask: single (T, T) iota compare broadcast over batch.
    # -inf is safe here: every row keeps col 0, so the max-subtract is finite.
    row = lax.broadcasted_iota(jnp.int32, (T, T), 0)
    col = lax.broadcasted_iota(jnp.int32, (T, T), 1)
    s = jnp.where((col <= row)[None, :, :], s, -jnp.inf)

    # Softmax in f32; normalization deferred and folded into the output.
    s = s - jnp.max(s, axis=-1, keepdims=True)
    p = jnp.exp(s)
    inv_denom = pl.reciprocal(jnp.sum(p, axis=-1, keepdims=True), approx=True)

    out = lax.dot_general(
        p.astype(jnp.bfloat16), v.astype(jnp.bfloat16),
        dimension_numbers=(((2,), (1,)), ((0,), (0,))),
        preferred_element_type=jnp.float32,
    )                                     # (B, T, H) f32
    o_ref[...] = (out * inv_denom).astype(o_ref.dtype)


def make_fused_head_weight(w_key, w_query, w_value, n_embed):
    """Init-time (call ONCE, not per forward): fuse [W_k | W_q | W_v] into a
    (C, 3H) operand, fold the module's C**-0.5 attention scale into the query
    columns, and store bf16 for the MXU's native input path."""
    scale = jnp.float32(n_embed) ** -0.5
    w_fused = jnp.concatenate([w_key, w_query * scale, w_value], axis=1)
    return w_fused.astype(jnp.bfloat16)


def head_forward(x, w_fused):
    """x: (B, T, C) f32; w_fused: (C, 3H) bf16 from make_fused_head_weight."""
    B, T, C = x.shape
    H = w_fused.shape[1] // 3
    # Single gridless invocation: whole problem fits trivially in VMEM.
    return pl.pallas_call(
        _head_kernel,
        out_shape=jax.ShapeDtypeStruct((B, T, H), jnp.float32),
        in_specs=[
            pl.BlockSpec(memory_space=pltpu.MemorySpace.VMEM),  # x (full)
            pl.BlockSpec(memory_space=pltpu.MemorySpace.VMEM),  # fused weight
        ],
        out_specs=pl.BlockSpec(memory_space=pltpu.MemorySpace.VMEM),
    )(x, w_fused)


def head_reference(x, w_key, w_query, w_value, tril):
    """Pure-JAX f32 reference mirroring the PyTorch forward."""
    B, T, C = x.shape
    k = x @ w_key
    q = x @ w_query
    v = x @ w_value
    wei = (q @ jnp.swapaxes(k, -2, -1)) * (C ** -0.5)
    wei = jnp.where(tril[:T, :T] == 0.0, -jnp.inf, wei)
    wei = jax.nn.softmax(wei, axis=-1)
    return wei @ v


if __name__ == "__main__":
    # Small shapes consistent with the module: T must be <= block_size (= 3).
    B = 2
    T = BLOCK_SIZE     # 3
    n_embed = 32
    head_size = 8

    key = jax.random.PRNGKey(0)
    kx, kk, kq, kv = jax.random.split(key, 4)

    x = jax.random.normal(kx, (B, T, n_embed), dtype=jnp.float32)

    # Deterministic parameter init (nn.Linear-like scaling), stored as (C, H).
    scale = 1.0 / jnp.sqrt(jnp.float32(n_embed))
    w_key = jax.random.uniform(kk, (n_embed, head_size), jnp.float32, -scale, scale)
    w_query = jax.random.uniform(kq, (n_embed, head_size), jnp.float32, -scale, scale)
    w_value = jax.random.uniform(kv, (n_embed, head_size), jnp.float32, -scale, scale)

    # Parameter-init time: fuse weights + fold score scale (once, not per call).
    w_fused = jax.block_until_ready(
        make_fused_head_weight(w_key, w_query, w_value, n_embed))

    out = jax.block_until_ready(head_forward(x, w_fused))

    tril = jnp.tril(jnp.ones((BLOCK_SIZE, BLOCK_SIZE), dtype=jnp.float32))
    ref = head_reference(x, w_key, w_query, w_value, tril)

    assert out.shape == (B, T, head_size)
    # Tolerance relaxed vs the f32 reference because the kernel intentionally
    # feeds the MXU bf16 operands (f32 accumulate) and uses an approx EUP
    # reciprocal for the softmax denominator.
    assert jnp.allclose(out, ref, atol=3e-2, rtol=3e-2), "mismatch vs reference"

    print("KERNEL_OK")
</pallas_src>

<mosaic_0001>
module attributes {stable_mosaic.version = 11 : i64} {
  func.func @_head_kernel(%arg0: memref<2x3x32xf32, #tpu.memory_space<vmem>>, %arg1: memref<32x24xbf16, #tpu.memory_space<vmem>>, %arg2: memref<2x3x8xf32, #tpu.memory_space<vmem>>) attributes {dimension_semantics = [], scalar_prefetch = 0 : i64, scratch_operands = 0 : i64, tpu.core_type = #tpu.core_type<tc>} {
    %c0 = arith.constant 0 : index
    %c0_0 = arith.constant 0 : index
    %c0_1 = arith.constant 0 : index
    %0 = vector.load %arg0[%c0, %c0_0, %c0_1] : memref<2x3x32xf32, #tpu.memory_space<vmem>>, vector<2x3x32xf32>
    %1 = arith.truncf %0 : vector<2x3x32xf32> to vector<2x3x32xbf16>
    %c0_2 = arith.constant 0 : index
    %c0_3 = arith.constant 0 : index
    %2 = vector.load %arg1[%c0_2, %c0_3] : memref<32x24xbf16, #tpu.memory_space<vmem>>, vector<32x24xbf16>
    %cst = arith.constant dense<0.000000e+00> : vector<2x3x24xf32>
    %3 = tpu.matmul %1, %2, %cst {dimension_numbers = #tpu.dot_dimension_numbers<[2], [0], [0, 1], [1], [0, 0, 0, 1, 1, 1], [], []>} : vector<2x3x32xbf16>, vector<32x24xbf16>, vector<2x3x24xf32> -> vector<2x3x24xf32>
    %4 = vector.extract_strided_slice %3 {offsets = [0, 0, 0], sizes = [2, 3, 8], strides = [1, 1, 1]} : vector<2x3x24xf32> to vector<2x3x8xf32>
    %5 = vector.extract_strided_slice %3 {offsets = [0, 0, 8], sizes = [2, 3, 8], strides = [1, 1, 1]} : vector<2x3x24xf32> to vector<2x3x8xf32>
    %6 = vector.extract_strided_slice %3 {offsets = [0, 0, 16], sizes = [2, 3, 8], strides = [1, 1, 1]} : vector<2x3x24xf32> to vector<2x3x8xf32>
    %7 = arith.truncf %5 : vector<2x3x8xf32> to vector<2x3x8xbf16>
    %8 = arith.truncf %4 : vector<2x3x8xf32> to vector<2x3x8xbf16>
    %cst_4 = arith.constant dense<0.000000e+00> : vector<2x3x3xf32>
    %9 = tpu.matmul %7, %8, %cst_4 {dimension_numbers = #tpu.dot_dimension_numbers<[2], [2], [1], [1], [0, 0, 0, 1, 1, 1], [0], [0]>} : vector<2x3x8xbf16>, vector<2x3x8xbf16>, vector<2x3x3xf32> -> vector<2x3x3xf32>
    %10 = tpu.iota {dimensions = array<i32: 0>} : vector<3x3xi32>
    %11 = tpu.iota {dimensions = array<i32: 1>} : vector<3x3xi32>
    %12 = arith.cmpi sle, %11, %10 : vector<3x3xi32>
    %13 = vector.shape_cast %12 : vector<3x3xi1> to vector<1x3x3xi1>
    %cst_5 = arith.constant 0xFF800000 : f32
    %14 = vector.shape_cast %13 : vector<1x3x3xi1> to vector<1x3x3xi1>
    %15 = vector.broadcast %14 : vector<1x3x3xi1> to vector<2x3x3xi1>
    %16 = vector.broadcast %cst_5 : f32 to vector<2x3x3xf32>
    %17 = arith.select %15, %9, %16 : vector<2x3x3xi1>, vector<2x3x3xf32>
    %cst_6 = arith.constant dense<0xFF800000> : vector<2x3xf32>
    %18 = vector.multi_reduction <maximumf>, %17, %cst_6 [2] : vector<2x3x3xf32> to vector<2x3xf32>
    %19 = vector.shape_cast %18 : vector<2x3xf32> to vector<2x3x1xf32>
    %20 = vector.broadcast %19 : vector<2x3x1xf32> to vector<2x3x3xf32>
    %21 = arith.subf %17, %20 : vector<2x3x3xf32>
    %22 = math.exp %21 : vector<2x3x3xf32>
    %cst_7 = arith.constant dense<0.000000e+00> : vector<2x3xf32>
    %23 = vector.multi_reduction <add>, %22, %cst_7 [2] : vector<2x3x3xf32> to vector<2x3xf32>
    %24 = vector.shape_cast %23 : vector<2x3xf32> to vector<2x3x1xf32>
    %25 = tpu.reciprocal %24 {approx = true} : vector<2x3x1xf32> -> vector<2x3x1xf32>
    %26 = arith.truncf %22 : vector<2x3x3xf32> to vector<2x3x3xbf16>
    %27 = arith.truncf %6 : vector<2x3x8xf32> to vector<2x3x8xbf16>
    %cst_8 = arith.constant dense<0.000000e+00> : vector<2x3x8xf32>
    %28 = tpu.matmul %26, %27, %cst_8 {dimension_numbers = #tpu.dot_dimension_numbers<[2], [1], [1], [2], [0, 0, 0, 1, 1, 2], [0], [0]>} : vector<2x3x3xbf16>, vector<2x3x8xbf16>, vector<2x3x8xf32> -> vector<2x3x8xf32>
    %29 = vector.broadcast %25 : vector<2x3x1xf32> to vector<2x3x8xf32>
    %30 = arith.mulf %28, %29 : vector<2x3x8xf32>
    %c0_9 = arith.constant 0 : index
    %c0_10 = arith.constant 0 : index
    %c0_11 = arith.constant 0 : index
    %31 = vector.load %arg2[%c0_9, %c0_10, %c0_11] : memref<2x3x8xf32, #tpu.memory_space<vmem>>, vector<2x3x8xf32>
    tpu.vector_store %arg2[%c0_9, %c0_10, %c0_11], %30 {strides = array<i32>} : memref<2x3x8xf32, #tpu.memory_space<vmem>>, vector<2x3x8xf32>,
    return
  }
}

</mosaic_0001>

<llo_original>
// kernel: tpu_custom_call.1
$region0: #{tpu_custom_call.1}
  #allocation0 [shape = 'u32[]', space=smem, size = 0x4, offset = 0x4, fixed_abs, tag = 'smem constant byte address 0x4 - core index']
  #allocation1 [shape = 'u32[72,128]{1,0:T(1,128)}', space=vmem, size = 0x9000, scoped, tag = 'internal scratch']
  %s0 = inlined_call_operand.vmem [shape: f32[2,3,32], index: 0, kind: input, shape index: {}]
  %s1 = inlined_call_operand.vmem [shape: bf16[32,24], index: 1, kind: input, shape index: {}]
  %s2 = inlined_call_operand.vmem [shape: f32[2,3,8], index: 2, kind: output, shape index: {}]
  %s3 = sld [smem:[#allocation0]]
  $region18: #{tpu_custom_call.1} parent=0
    _
  %s5 = ssub.s32 1, %s3
  %s6 = scalar_select 0, %s5, %s3
  // Predicated region
  $region2: #{tpu_custom_call.1} parent=0 // pred_check
    _
  $region3: #{tpu_custom_call.1} parent=0 // pred_check_branch
    %8 = sbr.rel (0) target = $region5
  $region4: #{tpu_custom_call.1} parent=0 // pred_region
    _
  $region5: #{tpu_custom_call.1} parent=0 // pred_fallthru
    _
  // Predicated region
  $region6: #{tpu_custom_call.1} parent=0 // pred_check
    _
  $region7: #{tpu_custom_call.1} parent=0 // pred_check_branch
    %10 = sbr.rel (0) target = $region9
  $region8: #{tpu_custom_call.1} parent=0 // pred_region
    _
  $region9: #{tpu_custom_call.1} parent=0 // pred_fallthru
    _
  %v12 = vld [vmem:[%s0] sm:$0x7]
  %v13 = vld [vmem:[%s0 + $0x4] sm:$0x7]
  %v14 = vpack.c.bf16 %v12, %v12
  %v15 = vpack.c.bf16 %v13, %v13
  %v16 = vld [vmem:[%s1] sm:$0xf]
  %v17 = vld [vmem:[%s1 + $0x4] sm:$0xf]
  %v18 = vld [vmem:[%s1 + $0x8] sm:$0xf]
  %v19 = vld [vmem:[%s1 + $0xc] sm:$0xf]
  %v22 = vrot.slane %v14, 3
  %v23 = vrot.slane %v15, 3
  %vm24 = vcmask 1040384
  %v27 = vsel %vm24, %v14, %v22
  %vm29 = vcmask 1041409
  %v30 = vsel %vm29, %v14, %v22
  %v32 = vrot.slane %v30, 1
  %v35 = vsel %vm24, %v15, %v23
  %v37 = vsel %vm29, %v15, %v23
  %v39 = vrot.slane %v37, 1
  %v40 = vunpack.i.l.s16 %v27
  %v41 = vunpack.i.h.s16 %v27
  %v42 = vunpack.i.l.s16 %v32
  %v43 = vunpack.i.l.s16 %v35
  %v44 = vunpack.i.h.s16 %v35
  %v45 = vunpack.i.l.s16 %v39
  %v46 = vpack.i.b16 %v41, %v40
  %v47 = vpack.i.b16 %v43, %v42
  %v48 = vpack.i.b16 %v45, %v44
  %50 = vst [vmem:[#allocation1] ss:$9 sm:$0xff] %v46
  %s52 = scalar_lea.vmem [#allocation1], 1
  %53 = vst [vmem:[%s52] ss:$9 sm:$0xff] %v47
  %s55 = scalar_lea.vmem [#allocation1], 2
  %56 = vst [vmem:[%s55] ss:$9 sm:$0xff] %v48
  %v57 = vld [vmem:[#allocation1] sm:$0xff]
  %v62 = vunpack.c.l.b16 %v16
  %v63 = vunpack.c.l.b16 %v17
  %v64 = vunpack.c.l.b16 %v18
  %v65 = vunpack.c.l.b16 %v19
  %v66 = vpack.c.b16 %v63, %v62
  %v67 = vpack.c.b16 %v65, %v64
  %vm70 = vcmask 261120
  %v71 = vsel %vm70, %v57, 0
  %73 = vmatpush.bf16.msra.mxu0 0
  %74 = vmatpush.bf16.msra.mxu0 0
  %75 = vmatpush.bf16.msra.mxu0 0
  %76 = vmatpush.bf16.msra.mxu0 0
  %77 = vmatpush.bf16.msra.mxu0 0
  %78 = vmatpush.bf16.msra.mxu0 0
  %79 = vmatpush.bf16.msra.mxu0 %v67
  %80 = vmatpush.bf16.msra.mxu0 %v66
  %81 = vmatmul.bf16.gmra.mxu0 %v71
  %v82 = vpop.f32.mrf.mxu0
  %v83 = vadd.f32 0.0, %v82
  %v84 = vpop.f32.mrf.mxu0
  %85 = vdwg.mxu0
  %v87 = vrot.slane %v83, 1
  %v88 = vrot.slane %v83, 2
  %v89 = vrot.slane %v83, 3
  %v90 = vrot.slane %v83, 4
  %v91 = vrot.slane %v83, 5
  %92 = vst [vmem:[#allocation1] ss:$9 sm:$0xff] %v83
  %s93 = scalar_lea.vmem [#allocation1], 1
  %94 = vst [vmem:[%s93] ss:$9 sm:$0xff] %v87
  %s95 = scalar_lea.vmem [#allocation1], 2
  %96 = vst [vmem:[%s95] ss:$9 sm:$0xff] %v88
  %v97 = vld [vmem:[#allocation1] sm:$0xff]
  %98 = vst [vmem:[#allocation1] ss:$9 sm:$0xff] %v89
  %99 = vst [vmem:[%s93] ss:$9 sm:$0xff] %v90
  %100 = vst [vmem:[%s95] ss:$9 sm:$0xff] %v91
  %v101 = vld [vmem:[#allocation1] sm:$0xff]
  %v104 = vpack.c.bf16 %v97, %v97
  %v105 = vpack.c.bf16 %v101, %v101
  %106 = vst [vmem:[#allocation1] ss:$9 sm:$0xff] %v83
  %s107 = scalar_lea.vmem [#allocation1], 1
  %108 = vst [vmem:[%s107] ss:$9 sm:$0xff] %v87
  %s109 = scalar_lea.vmem [#allocation1], 2
  %110 = vst [vmem:[%s109] ss:$9 sm:$0xff] %v88
  %v111 = vld [vmem:[#allocation1] sm:$0xff]
  %112 = vst [vmem:[#allocation1] ss:$9 sm:$0xff] %v89
  %113 = vst [vmem:[%s107] ss:$9 sm:$0xff] %v90
  %114 = vst [vmem:[%s109] ss:$9 sm:$0xff] %v91
  %v115 = vld [vmem:[#allocation1] sm:$0xff]
  %v118 = vpack.c.bf16 %v111, %v111
  %v119 = vpack.c.bf16 %v115, %v115
  %v121 = vunpack.c.l.b16 %v104
  %v122 = vpack.c.b16 %v121, %v121
  %123 = vrot.lane.b32.xlu0 %v122, 120
  %v124 = vpop.permute.xlu0 %123
  %vm125 = vcmask 64512
  %v127 = vsel %vm125, %v124, 0
  %v130 = vsel %vm125, %v118, 0
  %132 = vmatpush.bf16.xpose.msra.mxu0 0
  %133 = vmatpush.bf16.xpose.msra.mxu0 0
  %134 = vmatpush.bf16.xpose.msra.mxu0 0
  %135 = vmatpush.bf16.xpose.msra.mxu0 0
  %136 = vmatpush.bf16.xpose.msra.mxu0 0
  %137 = vmatpush.bf16.xpose.msra.mxu0 0
  %138 = vmatpush.bf16.xpose.msra.mxu0 0
  %139 = vmatpush.bf16.xpose.msra.mxu0 %v130
  %140 = vmatmul.bf16.gmra.mxu0 %v127
  %v141 = vpop.f32.mrf.mxu0
  %v142 = vadd.f32 0.0, %v141
  %v143 = vpop.f32.mrf.mxu0
  %144 = vdwg.mxu0
  %v146 = vunpack.c.l.b16 %v105
  %v147 = vpack.c.b16 %v146, %v146
  %148 = vrot.lane.b32.xlu0 %v147, 120
  %v149 = vpop.permute.xlu0 %148
  %v151 = vsel %vm125, %v149, 0
  %v154 = vsel %vm125, %v119, 0
  %156 = vmatpush.bf16.xpose.msra.mxu0 0
  %157 = vmatpush.bf16.xpose.msra.mxu0 0
  %158 = vmatpush.bf16.xpose.msra.mxu0 0
  %159 = vmatpush.bf16.xpose.msra.mxu0 0
  %160 = vmatpush.bf16.xpose.msra.mxu0 0
  %161 = vmatpush.bf16.xpose.msra.mxu0 0
  %162 = vmatpush.bf16.xpose.msra.mxu0 0
  %163 = vmatpush.bf16.xpose.msra.mxu0 %v154
  %164 = vmatmul.bf16.gmra.mxu0 %v151
  %v165 = vpop.f32.mrf.mxu0
  %v166 = vadd.f32 0.0, %v165
  %v167 = vpop.f32.mrf.mxu0
  %168 = vdwg.mxu0
  %v169 = vlaneseq
  %v170 = vshrl.u32 %v169, 7
  %v171 = vlaneseq
  %v172 = vand.u32 %v171, 127
  %vm173 = vcmp.le.s32.totalorder %v172, %v170
  %v174 = vsel %vm173, 1, 0
  %vm175 = vcmp.eq.s32.totalorder %v174, 1
  %v176 = vsel %vm175, %v142, -inf
  %v177 = vsel %vm175, %v166, -inf
  %vm178 = vcmask 18432
  %v179 = vsel %vm178, %v176, -inf
  %180 = vmax.xlane.f32.xlu0 %v179
  %v181 = vpop.xlane.xlu0 %180
  %v182 = vsel %vm178, %v177, -inf
  %183 = vmax.xlane.f32.xlu0 %v182
  %v184 = vpop.xlane.xlu0 %183
  %v185 = vsub.f32 %v176, %v181
  %v186 = vsub.f32 %v177, %v184
  %v187 = vmul.f32 %v185, 1.442695
  %v188 = vpow.pop %v187
  %v189 = vmul.f32 %v186, 1.442695
  %v190 = vpow.pop %v189
  %v191 = vsel %vm178, %v188, 0.0
  %192 = vadd.xlane.f32.xlu0 %v191
  %v193 = vpop.xlane.xlu0 %192
  %v194 = vsel %vm178, %v190, 0.0
  %195 = vadd.xlane.f32.xlu0 %v194
  %v196 = vpop.xlane.xlu0 %195
  %v197 = vrcp.pop %v193
  %v198 = vrcp.pop %v196
  %v199 = vpack.c.bf16 %v188, %v188
  %v200 = vpack.c.bf16 %v190, %v190
  %201 = vst [vmem:[#allocation1] ss:$9 sm:$0xff] %v83
  %s202 = scalar_lea.vmem [#allocation1], 1
  %203 = vst [vmem:[%s202] ss:$9 sm:$0xff] %v87
  %s204 = scalar_lea.vmem [#allocation1], 2
  %205 = vst [vmem:[%s204] ss:$9 sm:$0xff] %v88
  %v206 = vld [vmem:[#allocation1] sm:$0xff]
  %207 = vst [vmem:[#allocation1] ss:$9 sm:$0xff] %v89
  %208 = vst [vmem:[%s202] ss:$9 sm:$0xff] %v90
  %209 = vst [vmem:[%s204] ss:$9 sm:$0xff] %v91
  %v210 = vld [vmem:[#allocation1] sm:$0xff]
  %v213 = vpack.c.bf16 %v206, %v206
  %v214 = vpack.c.bf16 %v210, %v210
  %v216 = vunpack.c.l.b16 %v213
  %v217 = vpack.c.b16 %v216, %v216
  %218 = vrot.lane.b32.xlu0 %v217, 112
  %v219 = vpop.permute.xlu0 %218
  %vm220 = vcmask 23552
  %v222 = vsel %vm220, %v199, 0
  %vm224 = vcmask 1041408
  %v225 = vsel %vm24, 4294967295, 65535
  %v226 = vsel %vm224, %v225, 0
  %v228 = vand.u32 %v219, %v226
  %230 = vmatpush.bf16.msra.mxu0 0
  %231 = vmatpush.bf16.msra.mxu0 0
  %232 = vmatpush.bf16.msra.mxu0 0
  %233 = vmatpush.bf16.msra.mxu0 0
  %234 = vmatpush.bf16.msra.mxu0 0
  %235 = vmatpush.bf16.msra.mxu0 0
  %236 = vmatpush.bf16.msra.mxu0 0
  %237 = vmatpush.bf16.msra.mxu0 %v228
  %238 = vmatmul.bf16.gmra.mxu0 %v222
  %v239 = vpop.f32.mrf.mxu0
  %v240 = vadd.f32 0.0, %v239
  %v241 = vpop.f32.mrf.mxu0
  %242 = vdwg.mxu0
  %v244 = vunpack.c.l.b16 %v214
  %v245 = vpack.c.b16 %v244, %v244
  %246 = vrot.lane.b32.xlu0 %v245, 112
  %v247 = vpop.permute.xlu0 %246
  %v249 = vsel %vm220, %v200, 0
  %v252 = vand.u32 %v247, %v226
  %254 = vmatpush.bf16.msra.mxu0 0
  %255 = vmatpush.bf16.msra.mxu0 0
  %256 = vmatpush.bf16.msra.mxu0 0
  %257 = vmatpush.bf16.msra.mxu0 0
  %258 = vmatpush.bf16.msra.mxu0 0
  %259 = vmatpush.bf16.msra.mxu0 0
  %260 = vmatpush.bf16.msra.mxu0 0
  %261 = vmatpush.bf16.msra.mxu0 %v252
  %262 = vmatmul.bf16.gmra.mxu0 %v249
  %v263 = vpop.f32.mrf.mxu0
  %v264 = vadd.f32 0.0, %v263
  %v265 = vpop.f32.mrf.mxu0
  %266 = vdwg.mxu0
  %v267 = vmul.f32 %v240, %v197
  %v268 = vmul.f32 %v264, %v198
  %vm269 = vcmask 59392
  %270 = vst.msk [vmem:[%s2] sm:$0x7] %vm269, %v267
  %271 = vst.msk [vmem:[%s2 + $0x4] sm:$0x7] %vm269, %v268
  // Predicated region
  $region10: #{tpu_custom_call.1} parent=0 // pred_check
    _
  $region11: #{tpu_custom_call.1} parent=0 // pred_check_branch
    %273 = sbr.rel (0) target = $region13
  $region12: #{tpu_custom_call.1} parent=0 // pred_region
    _
  $region13: #{tpu_custom_call.1} parent=0 // pred_fallthru
    _
  // Predicated region
  $region14: #{tpu_custom_call.1} parent=0 // pred_check
    _
  $region15: #{tpu_custom_call.1} parent=0 // pred_check_branch
    %275 = sbr.rel (0) target = $region17
  $region16: #{tpu_custom_call.1} parent=0 // pred_region
    _
  $region17: #{tpu_custom_call.1} parent=0 // pred_fallthru
    _

</llo_original>
